<compile_context>
chip_gen: v5e
topology: v5e:2x2
jax: 0.10.0
libtpu: 0.0.40
codegen_flags: <defaults>
</compile_context>

<pallas_src>
import functools

import jax
import jax.numpy as jnp
from jax.experimental import pallas as pl
from jax.experimental.pallas import tpu as pltpu

_SUBLANE_PACK = 16                      # covers f32 (8) and bf16 (16) packing
_TARGET_TILE_BYTES = 2 * 1024 * 1024    # ~2 MiB per input stream per grid step


def _choose_tile_b(B: int, L: int, itemsize: int) -> int:
    """Rows per tile: ~2 MiB/stream, multiple of 16, or the full batch."""
    if B <= _SUBLANE_PACK:
        return B
    rows = _TARGET_TILE_BYTES // max(1, L * itemsize)
    if rows >= B:
        return B                         # single full-extent block
    return max(_SUBLANE_PACK, (rows // _SUBLANE_PACK) * _SUBLANE_PACK)


# ----------------------------------------------------------------------------
# Reduction path ('mean' / 'sum'): per-tile partial sums, finished in wrapper.
# ----------------------------------------------------------------------------
def _kl_partial_sum_kernel(mu_ref, lv_ref, out_ref, *, batch):
    i = pl.program_id(0)
    tile_b = mu_ref.shape[0]

    mu = mu_ref[...].astype(jnp.float32)
    lv = lv_ref[...].astype(jnp.float32)
    # exp() runs on the EUP slot; everything else is VPU — hidden under DMA.
    term = 1.0 + lv - mu * mu - jnp.exp(lv)

    # Mask rows of the ragged last tile (OOB rows hold unspecified data).
    row = jax.lax.broadcasted_iota(jnp.int32, term.shape, 0) + i * tile_b
    term = jnp.where(row < batch, term, 0.0)

    # Lane-dense per-tile partial: scalar splat into an (8,128)-aligned block.
    out_ref[...] = jnp.full(out_ref.shape, jnp.sum(term), jnp.float32)


@jax.jit
def _kl_raw_sum(mu, logvar):
    """sum over all elements of (1 + logvar - mu^2 - exp(logvar)), in f32."""
    B, L = mu.shape
    itemsize = jnp.dtype(mu.dtype).itemsize
    tile_b = _choose_tile_b(B, L, itemsize)
    num_tiles = pl.cdiv(B, tile_b)
    n = B * L

    kernel = functools.partial(_kl_partial_sum_kernel, batch=B)
    out = pl.pallas_call(
        kernel,
        out_shape=jax.ShapeDtypeStruct((num_tiles, 8, 128), jnp.float32),
        grid=(num_tiles,),
        in_specs=[
            pl.BlockSpec((tile_b, L), lambda i: (i, 0)),
            pl.BlockSpec((tile_b, L), lambda i: (i, 0)),
        ],
        out_specs=pl.BlockSpec((1, 8, 128), lambda i: (i, 0, 0)),
        compiler_params=pltpu.CompilerParams(
            dimension_semantics=("parallel",)),
        cost_estimate=pl.CostEstimate(
            flops=6 * n,
            transcendentals=n,
            bytes_accessed=2 * n * itemsize + num_tiles * 8 * 128 * 4),
    )(mu, logvar)
    # A handful of partials; trivial final reduce on the host side of the jit.
    return jnp.sum(out[:, 0, 0])


# ----------------------------------------------------------------------------
# Per-example path (reduction='none'): grid-tiled over batch.
# ----------------------------------------------------------------------------
def _kl_per_example_kernel(mu_ref, lv_ref, out_ref):
    mu = mu_ref[...].astype(jnp.float32)
    lv = lv_ref[...].astype(jnp.float32)
    out_ref[...] = -0.5 * jnp.sum(1.0 + lv - mu * mu - jnp.exp(lv),
                                  axis=-1, keepdims=True)


@jax.jit
def _kl_per_example(mu, logvar):
    B, L = mu.shape
    itemsize = jnp.dtype(mu.dtype).itemsize
    tile_b = _choose_tile_b(B, L, itemsize)
    num_tiles = pl.cdiv(B, tile_b)
    n = B * L

    out = pl.pallas_call(
        _kl_per_example_kernel,
        out_shape=jax.ShapeDtypeStruct((B, 1), jnp.float32),
        grid=(num_tiles,),
        in_specs=[
            pl.BlockSpec((tile_b, L), lambda i: (i, 0)),
            pl.BlockSpec((tile_b, L), lambda i: (i, 0)),
        ],
        # Lane width 1 -> masked stores, but output bytes are negligible here.
        out_specs=pl.BlockSpec((tile_b, 1), lambda i: (i, 0)),
        compiler_params=pltpu.CompilerParams(
            dimension_semantics=("parallel",)),
        cost_estimate=pl.CostEstimate(
            flops=6 * n,
            transcendentals=n,
            bytes_accessed=2 * n * itemsize + B * 4),
    )(mu, logvar)
    return out[:, 0]


class KLDivergenceLoss:
    """JAX/Pallas port of the PyTorch KLDivergenceLoss module."""

    def __init__(self, reduction: str = 'mean', beta: float = 1.0):
        if reduction not in ('mean', 'sum', 'none'):
            raise ValueError(f"unsupported reduction: {reduction}")
        self.reduction = reduction
        self.beta = beta

    def __call__(self, mu, logvar):
        # Keep native dtype (bf16 stays bf16 in HBM); kernels widen to f32.
        mu = jnp.asarray(mu)
        logvar = jnp.asarray(logvar)
        if mu.ndim != 2:
            mu = mu.reshape(mu.shape[0], -1)
            logvar = logvar.reshape(logvar.shape[0], -1)

        if self.reduction == 'none':
            return self.beta * _kl_per_example(mu, logvar)

        raw = _kl_raw_sum(mu, logvar)      # sum over all elements
        kl = -0.5 * raw                    # total KL (== sum over batch)
        if self.reduction == 'mean':
            kl = kl * (1.0 / mu.shape[0])  # static reciprocal, host-side
        return self.beta * kl


def _reference(mu, logvar, reduction='mean', beta=1.0):
    mu32 = jnp.asarray(mu).astype(jnp.float32)
    lv32 = jnp.asarray(logvar).astype(jnp.float32)
    kl_per = -0.5 * jnp.sum(1.0 + lv32 - mu32 ** 2 - jnp.exp(lv32), axis=-1)
    if reduction == 'mean':
        return beta * jnp.mean(kl_per)
    if reduction == 'sum':
        return beta * jnp.sum(kl_per)
    return beta * kl_per


if __name__ == "__main__":
    key = jax.random.PRNGKey(0)
    k1, k2 = jax.random.split(key)

    # Small primary case consistent with the module's [batch, latent_dim] spec.
    B, L = 4, 32
    mu = jax.random.normal(k1, (B, L), jnp.float32) * 0.5
    logvar = jax.random.normal(k2, (B, L), jnp.float32) * 0.1

    for reduction in ('mean', 'sum', 'none'):
        loss_fn = KLDivergenceLoss(reduction=reduction, beta=1.5)
        out = loss_fn(mu, logvar)
        jax.block_until_ready(out)
        ref = _reference(mu, logvar, reduction, 1.5)
        assert jnp.allclose(out, ref, rtol=1e-5, atol=1e-5), (reduction, out, ref)

    # bf16 inputs stay bf16 in HBM; kernels widen tiles to f32 internally.
    out_bf = KLDivergenceLoss('mean', 1.0)(mu.astype(jnp.bfloat16),
                                           logvar.astype(jnp.bfloat16))
    jax.block_until_ready(out_bf)
    ref_bf = _reference(mu.astype(jnp.bfloat16), logvar.astype(jnp.bfloat16))
    assert jnp.allclose(out_bf, ref_bf, rtol=2e-2, atol=2e-2), (out_bf, ref_bf)

    # Latent dim not a multiple of 128: full-extent lane block, no padding.
    km1, km2 = jax.random.split(jax.random.PRNGKey(2))
    mu3 = jax.random.normal(km1, (37, 48), jnp.float32) * 0.4
    lv3 = jax.random.normal(km2, (37, 48), jnp.float32) * 0.1
    out3 = KLDivergenceLoss('mean')(mu3, lv3)
    jax.block_until_ready(out3)
    assert jnp.allclose(out3, _reference(mu3, lv3, 'mean'), rtol=1e-5, atol=1e-5)

    # Larger case: grid > 1, ragged last tile exercises the in-kernel row mask.
    kb1, kb2 = jax.random.split(jax.random.PRNGKey(1))
    mu2 = jax.random.normal(kb1, (4100, 256), jnp.float32) * 0.3
    lv2 = jax.random.normal(kb2, (4100, 256), jnp.float32) * 0.1
    for reduction in ('mean', 'sum', 'none'):
        out2 = KLDivergenceLoss(reduction)(mu2, lv2)
        jax.block_until_ready(out2)
        ref2 = _reference(mu2, lv2, reduction)
        assert jnp.allclose(out2, ref2, rtol=1e-4, atol=1e-4), (reduction,)

    # bf16 with grid > 1 (tile_b multiple of 16 matches bf16 sublane packing).
    out2b = KLDivergenceLoss('sum')(mu2.astype(jnp.bfloat16),
                                    lv2.astype(jnp.bfloat16))
    jax.block_until_ready(out2b)
    ref2b = _reference(mu2.astype(jnp.bfloat16), lv2.astype(jnp.bfloat16), 'sum')
    assert jnp.allclose(out2b, ref2b, rtol=1e-3, atol=1e-3), (out2b, ref2b)

    print("KERNEL_OK")
</pallas_src>

<mosaic_0001>
module attributes {stable_mosaic.version = 11 : i64} {
  func.func @_kl_partial_sum_kernel(%arg0: i32, %arg1: memref<4x32xf32, #tpu.memory_space<vmem>>, %arg2: memref<4x32xf32, #tpu.memory_space<vmem>>, %arg3: memref<1x8x128xf32, #tpu.memory_space<vmem>>) attributes {dimension_semantics = [#tpu.dimension_semantics<parallel>], iteration_bounds = array<i64: 1>, scalar_prefetch = 0 : i64, scratch_operands = 0 : i64, tpu.core_type = #tpu.core_type<tc>, window_params = [{transform_indices = @transform_0, window_bounds = array<i64: 4, 32>}, {transform_indices = @transform_1, window_bounds = array<i64: 4, 32>}, {transform_indices = @transform_2, window_bounds = array<i64: 1, 8, 128>}]} {
    %c0 = arith.constant 0 : index
    %c0_0 = arith.constant 0 : index
    %0 = vector.load %arg1[%c0, %c0_0] : memref<4x32xf32, #tpu.memory_space<vmem>>, vector<4x32xf32>
    %c0_1 = arith.constant 0 : index
    %c0_2 = arith.constant 0 : index
    %1 = vector.load %arg2[%c0_1, %c0_2] : memref<4x32xf32, #tpu.memory_space<vmem>>, vector<4x32xf32>
    %cst = arith.constant 1.000000e+00 : f32
    %2 = vector.broadcast %cst : f32 to vector<4x32xf32>
    %3 = arith.addf %2, %1 : vector<4x32xf32>
    %4 = arith.mulf %0, %0 : vector<4x32xf32>
    %5 = arith.subf %3, %4 : vector<4x32xf32>
    %6 = math.exp %1 : vector<4x32xf32>
    %7 = arith.subf %5, %6 : vector<4x32xf32>
    %8 = tpu.iota {dimensions = array<i32: 0>} : vector<4x32xi32>
    %c4_i32 = arith.constant 4 : i32
    %9 = arith.muli %arg0, %c4_i32 : i32
    %10 = vector.broadcast %9 : i32 to vector<4x32xi32>
    %11 = arith.addi %8, %10 : vector<4x32xi32>
    %c4_i32_3 = arith.constant 4 : i32
    %12 = vector.broadcast %c4_i32_3 : i32 to vector<4x32xi32>
    %13 = arith.cmpi slt, %11, %12 : vector<4x32xi32>
    %cst_4 = arith.constant 0.000000e+00 : f32
    %14 = vector.broadcast %cst_4 : f32 to vector<4x32xf32>
    %15 = arith.select %13, %7, %14 : vector<4x32xi1>, vector<4x32xf32>
    %16 = vector.shape_cast %15 : vector<4x32xf32> to vector<1x4x32xf32>
    %cst_5 = arith.constant dense<0.000000e+00> : vector<1xf32>
    %17 = vector.multi_reduction <add>, %16, %cst_5 [1, 2] : vector<1x4x32xf32> to vector<1xf32>
    %18 = vector.shape_cast %17 : vector<1xf32> to vector<1x1x1xf32>
    %19 = vector.extract %18[0, 0, 0] : f32 from vector<1x1x1xf32>
    %20 = vector.broadcast %19 : f32 to vector<1x8x128xf32>
    %c0_6 = arith.constant 0 : index
    %c0_7 = arith.constant 0 : index
    %c0_8 = arith.constant 0 : index
    %21 = vector.load %arg3[%c0_6, %c0_7, %c0_8] : memref<1x8x128xf32, #tpu.memory_space<vmem>>, vector<1x8x128xf32>
    tpu.vector_store %arg3[%c0_6, %c0_7, %c0_8], %20 {strides = array<i32>} : memref<1x8x128xf32, #tpu.memory_space<vmem>>, vector<1x8x128xf32>,
    return
  }
  func.func @transform_0(%arg0: i32) -> (i32, i32) {
    %c0_i32 = arith.constant 0 : i32
    %c0_i32_0 = arith.constant 0 : i32
    return %arg0, %c0_i32 : i32, i32
  }
  func.func @transform_1(%arg0: i32) -> (i32, i32) {
    %c0_i32 = arith.constant 0 : i32
    %c0_i32_0 = arith.constant 0 : i32
    return %arg0, %c0_i32 : i32, i32
  }
  func.func @transform_2(%arg0: i32) -> (i32, i32, i32) {
    %c0_i32 = arith.constant 0 : i32
    %c0_i32_0 = arith.constant 0 : i32
    %c0_i32_1 = arith.constant 0 : i32
    return %arg0, %c0_i32, %c0_i32_0 : i32, i32, i32
  }
}

</mosaic_0001>

<llo_original>
// kernel: _kl_raw_sum.1
$region0: #{_kl_raw_sum.1}
  #allocation0 [shape = 'u32[]', space=smem, size = 0x4, offset = 0x4, fixed_abs, tag = 'smem constant byte address 0x4 - core index']
  #allocation1 [shape = 'u32[72,128]{1,0:T(1,128)}', space=vmem, size = 0x9000, scoped, tag = 'internal scratch']
  %s0 = inlined_call_operand.hbm [shape: f32[4,32], index: 0, kind: input, shape index: {}]
  %s1 = inlined_call_operand.hbm [shape: f32[4,32], index: 1, kind: input, shape index: {}]
  %s2 = inlined_call_operand.vmem [shape: f32[1,8,128], index: 2, kind: output, shape index: {}]
  %s3 = sld [smem:[#allocation0]]
  $region26: #{_kl_raw_sum.1} parent=0
    _
  %s5 = ssub.s32 1, %s3
  %s6 = scalar_select 0, %s5, %s3
  $region1: #{_kl_raw_sum.1} parent=0
    #allocation2 [shape = 'u8[2048]{0}', space=vmem, size = 0x800, scoped, tag = 'input window, operand 0, single buffered']
    #allocation3 [shape = 's32[1]{0}', space=sflag, size = 0x4, scoped, tag = 'scoped memory for _kl_raw_sum.1']
    #allocation4 [shape = 'u8[2048]{0}', space=vmem, size = 0x800, scoped, tag = 'input window, operand 1, single buffered']
    #allocation5 [shape = 's32[1]{0}', space=sflag, size = 0x4, scoped, tag = 'scoped memory for _kl_raw_sum.1']
    %7 = vsyncpa [#allocation3], 0
    %8 = vsyncpa [#allocation5], 0
    // Predicated region
    $region2: #{_kl_raw_sum.1} parent=1 // pred_check
      _
    $region3: #{_kl_raw_sum.1} parent=1 // pred_check_branch
      %10 = sbr.rel (0) target = $region5
    $region4: #{_kl_raw_sum.1} parent=1 // pred_region
      %12 = vsyncadd [#allocation3], 0
      %s14 = sshll.u32 %s0, 4
      %s15 = int_to_ptr.hbm [resolvable:$true] %s14
      %s16 = sshll.u32 [#allocation2], 4
      %s17 = int_to_ptr.vmem [resolvable:$true] %s16
      %19 = dma.hbm_to_vmem [thread:$0]  %s15, 64, %s17, [#allocation3]
    $region5: #{_kl_raw_sum.1} parent=1 // pred_fallthru
      _
    // Predicated region
    $region6: #{_kl_raw_sum.1} parent=1 // pred_check
      _
    $region7: #{_kl_raw_sum.1} parent=1 // pred_check_branch
      %21 = sbr.rel (0) target = $region9
    $region8: #{_kl_raw_sum.1} parent=1 // pred_region
      %23 = vsyncadd [#allocation5], 0
      %s25 = sshll.u32 %s1, 4
      %s26 = int_to_ptr.hbm [resolvable:$true] %s25
      %s27 = sshll.u32 [#allocation4], 4
      %s28 = int_to_ptr.vmem [resolvable:$true] %s27
      %30 = dma.hbm_to_vmem [thread:$0]  %s26, 64, %s28, [#allocation5]
    $region9: #{_kl_raw_sum.1} parent=1 // pred_fallthru
      _
    // Predicated region
    $region10: #{_kl_raw_sum.1} parent=1 // pred_check
      _
    $region11: #{_kl_raw_sum.1} parent=1 // pred_check_branch
      %32 = sbr.rel (0) target = $region13
    $region12: #{_kl_raw_sum.1} parent=1 // pred_region
      %34 = dma.done [#allocation3], 64
    $region13: #{_kl_raw_sum.1} parent=1 // pred_fallthru
      _
    // Predicated region
    $region14: #{_kl_raw_sum.1} parent=1 // pred_check
      _
    $region15: #{_kl_raw_sum.1} parent=1 // pred_check_branch
      %36 = sbr.rel (0) target = $region17
    $region16: #{_kl_raw_sum.1} parent=1 // pred_region
      %38 = dma.done [#allocation5], 64
    $region17: #{_kl_raw_sum.1} parent=1 // pred_fallthru
      _
    %v39 = vld [vmem:[#allocation2] sm:$0xf]
    %v40 = vld [vmem:[#allocation4] sm:$0xf]
    %v41 = vadd.f32 %v40, 1.0
    %v42 = vmul.f32 %v39, %v39
    %v43 = vsub.f32 %v41, %v42
    %v44 = vmul.f32 %v40, 1.442695
    %v45 = vpow.pop %v44
    %v46 = vsub.f32 %v43, %v45
    %v47 = vlaneseq
    %v48 = vshrl.u32 %v47, 7
    %s49 = smul.u32 0, 4
    %v50 = vstv %s49
    %v51 = vadd.s32 %v48, %v50
    %vm52 = vcmp.lt.s32.totalorder %v51, 4
    %v53 = vsel %vm52, %v46, 0.0
    %vm54 = vcmask 257024
    %v55 = vsel %vm54, %v53, 0.0
    %56 = vadd.xlane.f32.xlu0 %v55
    %v57 = vpop.xlane.xlu0 %56
    %v58 = vrot.slane %v57, 4
    %v59 = vadd.f32 %v57, %v58
    %v60 = vrot.slane %v59, 2
    %v61 = vadd.f32 %v59, %v60
    %v62 = vrot.slane %v61, 1
    %v63 = vadd.f32 %v61, %v62
    %s64 = vtos %v63
    %v65 = vstv %s64
    %66 = vst [vmem:[%s2] sm:$0xff] %v65
    // Predicated region
    $region18: #{_kl_raw_sum.1} parent=1 // pred_check
      _
    $region19: #{_kl_raw_sum.1} parent=1 // pred_check_branch
      %68 = sbr.rel (0) target = $region21
    $region20: #{_kl_raw_sum.1} parent=1 // pred_region
      _
    $region21: #{_kl_raw_sum.1} parent=1 // pred_fallthru
      _
    // Predicated region
    $region22: #{_kl_raw_sum.1} parent=1 // pred_check
      _
    $region23: #{_kl_raw_sum.1} parent=1 // pred_check_branch
      %70 = sbr.rel (0) target = $region25
    $region24: #{_kl_raw_sum.1} parent=1 // pred_region
      _
    $region25: #{_kl_raw_sum.1} parent=1 // pred_fallthru
      _
    %71 = vsyncpa [#allocation3], 1
    %72 = vsyncpa [#allocation5], 1

</llo_original>
